<compile_context>
chip_gen: v7x
topology: tpu7x:2x2x1
jax: 0.10.0
libtpu: 0.0.40
codegen_flags: <defaults>
</compile_context>

<pallas_src>
import functools

import jax
import jax.numpy as jnp
from jax.experimental import pallas as pl
from jax.experimental.pallas import tpu as pltpu

# In the original script these come from argparse; fixed here deterministically.
N_TANK = 3
HIDDEN_LAYERS = (32, 32)
OUT_DIM = 2 * N_TANK - 1          # 5
SUBLANE = 8
OUT_PAD = ((OUT_DIM + SUBLANE - 1) // SUBLANE) * SUBLANE   # 8


def _pinn_kernel(num_layers, n_tank, use_bf16, *refs):
    """refs = (t_ref, W0, b0, W1, b1, ..., W_{L-1}, b_{L-1}, out_ref).

    t_ref:   (1, bb)              batch on lanes
    W_i:     (out_i, in_i)        resident in VMEM across grid steps
    b_i:     (out_i, 1)           last layer zero-padded to OUT_PAD rows
    out_ref: (OUT_PAD, bb)
    """
    t_ref = refs[0]
    out_ref = refs[-1]
    param_refs = refs[1:-1]

    t = t_ref[...]                                # (1, bb) f32
    h = t
    for li in range(num_layers):
        w = param_refs[2 * li][...]               # (out, in)
        b = param_refs[2 * li + 1][...]           # (out, 1)
        if li == 0:
            # in_dim == 1: broadcast outer product on the VPU instead of a
            # degenerate K=1 MXU matmul: (H1,1) * (1,bb) + (H1,1) -> (H1,bb)
            h = w * h + b
        else:
            if use_bf16:
                h = jnp.dot(w.astype(jnp.bfloat16), h.astype(jnp.bfloat16),
                            preferred_element_type=jnp.float32) + b
            else:
                h = jnp.dot(w, h, preferred_element_type=jnp.float32) + b
        if li < num_layers - 1:                   # Tanh on hidden layers only
            h = jnp.tanh(h)

    u = h                                         # (OUT_PAD, bb); rows >= OUT_DIM are 0
    # hard_BC: row n_tank-1 -> 2 - t*u, others -> t*u.  Padded rows give
    # abs(t * 0) == 0 automatically (n_tank-1 < OUT_DIM), so the store is a
    # dense, unmasked (8, bb) slab.
    row = jax.lax.broadcasted_iota(jnp.int32, (u.shape[0], 1), 0)
    tu = t * u                                    # (1,bb) * (OUT_PAD,bb) broadcast
    u_bc = jnp.where(row == n_tank - 1, 2.0 - tu, tu)
    out_ref[...] = jnp.abs(u_bc)


def _round_up(x, m):
    return pl.cdiv(x, m) * m


def _choose_block(batch, max_block=1024):
    """Pick the batch block so the grid is 1-2 steps (even on v7x for 2 TCs)."""
    b128 = _round_up(batch, 128)
    if b128 <= max_block:
        bb = b128                                         # grid of 1
    else:
        bb = min(max_block, _round_up(pl.cdiv(b128, 2), 128))  # aim for grid of 2
    b_pad = _round_up(batch, bb)
    return bb, b_pad


def pinn_forward_slab(t, params, *, max_block=1024, use_bf16=False):
    """Lane-major forward. t: (B, 1) f32; params: [(W:(in,out), b:(out,)), ...].

    Returns the (OUT_PAD, B) slab (rows >= OUT_DIM are zero); row-major
    (B, OUT_DIM) is available via pinn_forward().
    """
    num_layers = len(params)
    batch = t.shape[0]
    out_dim = params[-1][0].shape[1]
    out_pad = _round_up(out_dim, SUBLANE)

    bb, b_pad = _choose_block(batch, max_block=max_block)

    t_row = t.reshape(1, batch).astype(jnp.float32)
    if b_pad != batch:
        t_row = jnp.pad(t_row, ((0, 0), (0, b_pad - batch)))

    flat_args = [t_row]
    in_specs = [pl.BlockSpec((1, bb), lambda i: (0, i))]
    for li, (w, b) in enumerate(params):
        wt = jnp.asarray(w, jnp.float32).T                 # (out, in)
        bt = jnp.asarray(b, jnp.float32).reshape(-1, 1)    # (out, 1)
        if li == num_layers - 1 and out_pad != out_dim:
            # Zero-pad the last layer rows -> dense 8-sublane output slab.
            wt = jnp.pad(wt, ((0, out_pad - out_dim), (0, 0)))
            bt = jnp.pad(bt, ((0, out_pad - out_dim), (0, 0)))
        flat_args += [wt, bt]
        # Constant index_map -> parameters stay resident in VMEM across grid steps.
        in_specs += [pl.BlockSpec(wt.shape, lambda i: (0, 0)),
                     pl.BlockSpec(bt.shape, lambda i: (0, 0))]

    kernel = functools.partial(_pinn_kernel, num_layers, N_TANK, use_bf16)
    out_slab = pl.pallas_call(
        kernel,
        out_shape=jax.ShapeDtypeStruct((out_pad, b_pad), jnp.float32),
        grid=(b_pad // bb,),
        in_specs=in_specs,
        out_specs=pl.BlockSpec((out_pad, bb), lambda i: (0, i)),
        compiler_params=pltpu.CompilerParams(
            dimension_semantics=("parallel",)),    # v7x: shard batch over both TCs
    )(*flat_args)

    if b_pad != batch:
        out_slab = out_slab[:, :batch]
    return out_slab                                        # (OUT_PAD, B)


def pinn_forward(t, params, *, max_block=1024, use_bf16=False):
    """PyTorch-module-facing layout: (B, 2*N_TANK-1)."""
    out_dim = params[-1][0].shape[1]
    slab = pinn_forward_slab(t, params, max_block=max_block, use_bf16=use_bf16)
    return slab[:out_dim, :].T


def init_params(key):
    """PyTorch-default-style U(-1/sqrt(fan_in), 1/sqrt(fan_in)) init, deterministic."""
    dims = [1] + list(HIDDEN_LAYERS) + [OUT_DIM]
    params = []
    for i in range(len(dims) - 1):
        fan_in = dims[i]
        bound = 1.0 / (fan_in ** 0.5)
        key, k_w, k_b = jax.random.split(key, 3)
        w = jax.random.uniform(k_w, (dims[i], dims[i + 1]), jnp.float32, -bound, bound)
        b = jax.random.uniform(k_b, (dims[i + 1],), jnp.float32, -bound, bound)
        params.append((w, b))
    return params


def _reference_forward(t, params):
    """Pure-JAX reference (batch-on-rows layout like PyTorch)."""
    h = t
    for li, (w, b) in enumerate(params):
        h = h @ w + b
        if li < len(params) - 1:
            h = jnp.tanh(h)
    col = jnp.arange(OUT_DIM)[None, :]
    tu = t * h
    u_bc = jnp.where(col == N_TANK - 1, 2.0 - tu, tu)
    return jnp.abs(u_bc)


if __name__ == "__main__":
    key = jax.random.PRNGKey(0)
    key, k_t = jax.random.split(key)

    # Collocation batch: 2048 points -> bb = 1024, grid = (2,) (even: both v7x TCs).
    batch = 2048
    t = jax.random.uniform(k_t, (batch, 1), jnp.float32)    # collocation times in [0, 1)
    params = init_params(key)

    # Lane-major slab (what a fused loss/residual should consume directly).
    slab = pinn_forward_slab(t, params)
    slab = jax.block_until_ready(slab)

    ref = _reference_forward(t, params)                      # (B, OUT_DIM)
    assert slab.shape == (OUT_PAD, batch), slab.shape
    assert jnp.allclose(slab[:OUT_DIM, :], ref.T, atol=1e-5, rtol=1e-5), \
        "slab mismatch vs reference"
    assert jnp.allclose(slab[OUT_DIM:, :], 0.0), "padded output rows not zero"

    # Module-facing (B, OUT_DIM) layout.
    out = jax.block_until_ready(pinn_forward(t, params))
    assert out.shape == (batch, OUT_DIM), out.shape
    assert jnp.allclose(out, ref, atol=1e-5, rtol=1e-5), "mismatch vs reference"

    print("KERNEL_OK")
</pallas_src>

<mosaic_0001>
module attributes {stable_mosaic.version = 11 : i64} {
  func.func @_pinn_kernel(%arg0: i32, %arg1: memref<1x1024xf32, #tpu.memory_space<vmem>>, %arg2: memref<32x1xf32, #tpu.memory_space<vmem>>, %arg3: memref<32x1xf32, #tpu.memory_space<vmem>>, %arg4: memref<32x32xf32, #tpu.memory_space<vmem>>, %arg5: memref<32x1xf32, #tpu.memory_space<vmem>>, %arg6: memref<8x32xf32, #tpu.memory_space<vmem>>, %arg7: memref<8x1xf32, #tpu.memory_space<vmem>>, %arg8: memref<8x1024xf32, #tpu.memory_space<vmem>>) attributes {dimension_semantics = [#tpu.dimension_semantics<parallel>], iteration_bounds = array<i64: 2>, scalar_prefetch = 0 : i64, scratch_operands = 0 : i64, tpu.core_type = #tpu.core_type<tc>, window_params = [{transform_indices = @transform_0, window_bounds = array<i64: 1, 1024>}, {pipeline_mode = #tpu.pipeline_mode<synchronous>, transform_indices = @transform_1, window_bounds = array<i64: 32, 1>}, {pipeline_mode = #tpu.pipeline_mode<synchronous>, transform_indices = @transform_2, window_bounds = array<i64: 32, 1>}, {pipeline_mode = #tpu.pipeline_mode<synchronous>, transform_indices = @transform_3, window_bounds = array<i64: 32, 32>}, {pipeline_mode = #tpu.pipeline_mode<synchronous>, transform_indices = @transform_4, window_bounds = array<i64: 32, 1>}, {pipeline_mode = #tpu.pipeline_mode<synchronous>, transform_indices = @transform_5, window_bounds = array<i64: 8, 32>}, {pipeline_mode = #tpu.pipeline_mode<synchronous>, transform_indices = @transform_6, window_bounds = array<i64: 8, 1>}, {transform_indices = @transform_7, window_bounds = array<i64: 8, 1024>}]} {
    %c0 = arith.constant 0 : index
    %c0_0 = arith.constant 0 : index
    %0 = vector.load %arg1[%c0, %c0_0] : memref<1x1024xf32, #tpu.memory_space<vmem>>, vector<1x1024xf32>
    %c0_1 = arith.constant 0 : index
    %c0_2 = arith.constant 0 : index
    %1 = vector.load %arg2[%c0_1, %c0_2] : memref<32x1xf32, #tpu.memory_space<vmem>>, vector<32x1xf32>
    %c0_3 = arith.constant 0 : index
    %c0_4 = arith.constant 0 : index
    %2 = vector.load %arg3[%c0_3, %c0_4] : memref<32x1xf32, #tpu.memory_space<vmem>>, vector<32x1xf32>
    %3 = vector.broadcast %1 : vector<32x1xf32> to vector<32x1024xf32>
    %4 = vector.broadcast %0 : vector<1x1024xf32> to vector<32x1024xf32>
    %5 = arith.mulf %3, %4 : vector<32x1024xf32>
    %6 = vector.broadcast %2 : vector<32x1xf32> to vector<32x1024xf32>
    %7 = arith.addf %5, %6 : vector<32x1024xf32>
    %8 = math.tanh %7 : vector<32x1024xf32>
    %c0_5 = arith.constant 0 : index
    %c0_6 = arith.constant 0 : index
    %9 = vector.load %arg4[%c0_5, %c0_6] : memref<32x32xf32, #tpu.memory_space<vmem>>, vector<32x32xf32>
    %c0_7 = arith.constant 0 : index
    %c0_8 = arith.constant 0 : index
    %10 = vector.load %arg5[%c0_7, %c0_8] : memref<32x1xf32, #tpu.memory_space<vmem>>, vector<32x1xf32>
    %cst = arith.constant dense<0.000000e+00> : vector<32x1024xf32>
    %11 = tpu.matmul %9, %8, %cst {dimension_numbers = #tpu.dot_dimension_numbers<[1], [0], [0], [1], [0, 0, 1, 1], [], []>} : vector<32x32xf32>, vector<32x1024xf32>, vector<32x1024xf32> -> vector<32x1024xf32>
    %12 = vector.broadcast %10 : vector<32x1xf32> to vector<32x1024xf32>
    %13 = arith.addf %11, %12 : vector<32x1024xf32>
    %14 = math.tanh %13 : vector<32x1024xf32>
    %c0_9 = arith.constant 0 : index
    %c0_10 = arith.constant 0 : index
    %15 = vector.load %arg6[%c0_9, %c0_10] : memref<8x32xf32, #tpu.memory_space<vmem>>, vector<8x32xf32>
    %c0_11 = arith.constant 0 : index
    %c0_12 = arith.constant 0 : index
    %16 = vector.load %arg7[%c0_11, %c0_12] : memref<8x1xf32, #tpu.memory_space<vmem>>, vector<8x1xf32>
    %cst_13 = arith.constant dense<0.000000e+00> : vector<8x1024xf32>
    %17 = tpu.matmul %15, %14, %cst_13 {dimension_numbers = #tpu.dot_dimension_numbers<[1], [0], [0], [1], [0, 0, 1, 1], [], []>} : vector<8x32xf32>, vector<32x1024xf32>, vector<8x1024xf32> -> vector<8x1024xf32>
    %18 = vector.broadcast %16 : vector<8x1xf32> to vector<8x1024xf32>
    %19 = arith.addf %17, %18 : vector<8x1024xf32>
    %20 = tpu.iota {dimensions = array<i32: 0>} : vector<8x1xi32>
    %21 = vector.broadcast %0 : vector<1x1024xf32> to vector<8x1024xf32>
    %22 = arith.mulf %21, %19 : vector<8x1024xf32>
    %c2_i32 = arith.constant 2 : i32
    %23 = vector.broadcast %c2_i32 : i32 to vector<8x1xi32>
    %24 = arith.cmpi eq, %20, %23 : vector<8x1xi32>
    %cst_14 = arith.constant 2.000000e+00 : f32
    %25 = vector.broadcast %cst_14 : f32 to vector<8x1024xf32>
    %26 = arith.subf %25, %22 : vector<8x1024xf32>
    %27 = vector.shape_cast %24 : vector<8x1xi1> to vector<8x1xi1>
    %28 = vector.broadcast %27 : vector<8x1xi1> to vector<8x1024xi1>
    %29 = arith.select %28, %26, %22 : vector<8x1024xi1>, vector<8x1024xf32>
    %30 = math.absf %29 : vector<8x1024xf32>
    %c0_15 = arith.constant 0 : index
    %c0_16 = arith.constant 0 : index
    %31 = vector.load %arg8[%c0_15, %c0_16] : memref<8x1024xf32, #tpu.memory_space<vmem>>, vector<8x1024xf32>
    tpu.vector_store %arg8[%c0_15, %c0_16], %30 {strides = array<i32>} : memref<8x1024xf32, #tpu.memory_space<vmem>>, vector<8x1024xf32>,
    return
  }
  func.func @transform_0(%arg0: i32) -> (i32, i32) {
    %c0_i32 = arith.constant 0 : i32
    %c0_i32_0 = arith.constant 0 : i32
    return %c0_i32, %arg0 : i32, i32
  }
  func.func @transform_1(%arg0: i32) -> (i32, i32) {
    %c0_i32 = arith.constant 0 : i32
    %c0_i32_0 = arith.constant 0 : i32
    %c0_i32_1 = arith.constant 0 : i32
    return %c0_i32, %c0_i32_0 : i32, i32
  }
  func.func @transform_2(%arg0: i32) -> (i32, i32) {
    %c0_i32 = arith.constant 0 : i32
    %c0_i32_0 = arith.constant 0 : i32
    %c0_i32_1 = arith.constant 0 : i32
    return %c0_i32, %c0_i32_0 : i32, i32
  }
  func.func @transform_3(%arg0: i32) -> (i32, i32) {
    %c0_i32 = arith.constant 0 : i32
    %c0_i32_0 = arith.constant 0 : i32
    %c0_i32_1 = arith.constant 0 : i32
    return %c0_i32, %c0_i32_0 : i32, i32
  }
  func.func @transform_4(%arg0: i32) -> (i32, i32) {
    %c0_i32 = arith.constant 0 : i32
    %c0_i32_0 = arith.constant 0 : i32
    %c0_i32_1 = arith.constant 0 : i32
    return %c0_i32, %c0_i32_0 : i32, i32
  }
  func.func @transform_5(%arg0: i32) -> (i32, i32) {
    %c0_i32 = arith.constant 0 : i32
    %c0_i32_0 = arith.constant 0 : i32
    %c0_i32_1 = arith.constant 0 : i32
    return %c0_i32, %c0_i32_0 : i32, i32
  }
  func.func @transform_6(%arg0: i32) -> (i32, i32) {
    %c0_i32 = arith.constant 0 : i32
    %c0_i32_0 = arith.constant 0 : i32
    %c0_i32_1 = arith.constant 0 : i32
    return %c0_i32, %c0_i32_0 : i32, i32
  }
  func.func @transform_7(%arg0: i32) -> (i32, i32) {
    %c0_i32 = arith.constant 0 : i32
    %c0_i32_0 = arith.constant 0 : i32
    return %c0_i32, %arg0 : i32, i32
  }
}

</mosaic_0001>

<llo_original>
// kernel: tpu_custom_call.1
$region0: #{tpu_custom_call.1}
  #allocation0 [shape = 'u32[]', space=smem, size = 0x4, offset = 0x4, fixed_abs, tag = 'smem constant byte address 0x4 - core index']
  #allocation1 [shape = 'u32[144,128]{1,0:T(1,128)}', space=vmem, size = 0x12000, scoped, tag = 'internal scratch']
  %s0 = inlined_call_operand.vmem [shape: f32[1,2048], index: 0, kind: input, shape index: {}]
  %s1 = inlined_call_operand.vmem [shape: f32[32,1], index: 1, kind: input, shape index: {}]
  %s2 = inlined_call_operand.vmem [shape: f32[32,1], index: 2, kind: input, shape index: {}]
  %s3 = inlined_call_operand.vmem [shape: f32[32,32], index: 3, kind: input, shape index: {}]
  %s4 = inlined_call_operand.vmem [shape: f32[32,1], index: 4, kind: input, shape index: {}]
  %s5 = inlined_call_operand.vmem [shape: f32[8,32], index: 5, kind: input, shape index: {}]
  %s6 = inlined_call_operand.vmem [shape: f32[8,1], index: 6, kind: input, shape index: {}]
  %s7 = inlined_call_operand.hbm [shape: f32[8,2048], index: 7, kind: output, shape index: {}]
  %s8 = sld [smem:[#allocation0]]
  $region61: #{tpu_custom_call.1} parent=0
    _
  %s10 = ssub.s32 1, %s8
  %s11 = scalar_select 0, %s10, %s8
  $region1: #{tpu_custom_call.1} parent=0
    #allocation2 [shape = 'u8[65536]{0}', space=vmem, size = 0x10000, scoped, tag = 'output window, operand 0']
    #allocation3 [shape = 's32[2]{0}', space=sflag, size = 0x8, scoped, tag = 'scoped memory for tpu_custom_call.1']
    %12 = vsyncpa [#allocation3], 0
    %s13 = scalar_lea.sflag [#allocation3], 1
    %14 = vsyncpa %s13, 0
    loop: start=0, step=1, limit=4
    $region2: #{tpu_custom_call.1} parent=1 // loop_pre_header
      _
    $region3: #{tpu_custom_call.1} parent=1 // loop_header
      %s16 = sphi 0, %s20
      %p17 = scmp.ge.s32.totalorder %s16, 4
      %s26 = sphi 0, %s28
      %s29 = sphi 0, %s26
      %s30 = sphi 0, %s29
      %s46 = sphi 0, %s30
      %s50 = sphi 0, %s50
      %s52 = sphi 0, %s50
      %s53 = sphi 0, %s52
      %s67 = sphi 0, %s53
      %s71 = sphi 0, %s71
      %s73 = sphi 0, %s71
      %s74 = sphi 0, %s73
      %s88 = sphi 0, %s74
      %s92 = sphi 0, %s92
      %s94 = sphi 0, %s92
      %s95 = sphi 0, %s94
      %s109 = sphi 0, %s95
      %s113 = sphi 0, %s113
      %s115 = sphi 0, %s113
      %s116 = sphi 0, %s115
      %s130 = sphi 0, %s116
      %s134 = sphi 0, %s134
      %s136 = sphi 0, %s134
      %s137 = sphi 0, %s136
      %s151 = sphi 0, %s137
      %s155 = sphi 0, %s155
      %s157 = sphi 0, %s155
      %s158 = sphi 0, %s157
      %s172 = sphi 0, %s158
      %s178 = sphi 0, %s180
      %s181 = sphi 0, %s178
      %s182 = sphi 0, %s181
      %s198 = sphi 0, %s182
    $region4: #{tpu_custom_call.1} parent=1 // loop_header_branch
      %19 = sbr.rel (%p17) target = $region8
    $region5: #{tpu_custom_call.1} parent=1 // loop_body
      %s21 = ssub.s32 %s16, 1
      %s22 = ssub.s32 %s16, 2
      %s23 = sadd.s32 %s16, 1
      %s24 = ssub.s32 %s16, %s23
      %p25 = scmp.eq.s32.totalorder %s24, 0
      %s27 = sadd.s32 %s26, 1
      %s28 = scalar_select %p25, %s26, %s27
      %p31 = pneg %p25
      %p32 = scmp.eq.s32.totalorder %s16, 1
      %p33 = por %p31, %p32
      %p34 = scmp.ne.s32.totalorder %s26, %s29
      %p35 = scmp.eq.s32.totalorder %s16, 0
      %p36 = por %p34, %p35
      %p37 = scmp.ne.s32.totalorder %s26, %s29
      %p38 = scmp.eq.s32.totalorder %s21, 1
      %p39 = por %p37, %p38
      %p40 = scmp.ne.s32.totalorder %s29, %s30
      %p41 = scmp.eq.s32.totalorder %s21, 0
      %p42 = por %p40, %p41
      %p43 = scmp.ne.s32.totalorder %s29, %s30
      %p44 = scmp.eq.s32.totalorder %s22, 1
      %p45 = por %p43, %p44
      %p47 = scmp.ne.s32.totalorder %s30, %s46
      %p48 = scmp.eq.s32.totalorder %s22, 0
      %p49 = por %p47, %p48
      %s51 = sadd.s32 %s50, 1
      %p54 = scmp.eq.s32.totalorder %s16, 1
      %p55 = scmp.ne.s32.totalorder %s50, %s52
      %p56 = scmp.eq.s32.totalorder %s16, 0
      %p57 = por %p55, %p56
      %p58 = scmp.ne.s32.totalorder %s50, %s52
      %p59 = scmp.eq.s32.totalorder %s21, 1
      %p60 = por %p58, %p59
      %p61 = scmp.ne.s32.totalorder %s52, %s53
      %p62 = scmp.eq.s32.totalorder %s21, 0
      %p63 = por %p61, %p62
      %p64 = scmp.ne.s32.totalorder %s52, %s53
      %p65 = scmp.eq.s32.totalorder %s22, 1
      %p66 = por %p64, %p65
      %p68 = scmp.ne.s32.totalorder %s53, %s67
      %p69 = scmp.eq.s32.totalorder %s22, 0
      %p70 = por %p68, %p69
      %s72 = sadd.s32 %s71, 1
      %p75 = scmp.eq.s32.totalorder %s16, 1
      %p76 = scmp.ne.s32.totalorder %s71, %s73
      %p77 = scmp.eq.s32.totalorder %s16, 0
      %p78 = por %p76, %p77
      %p79 = scmp.ne.s32.totalorder %s71, %s73
      %p80 = scmp.eq.s32.totalorder %s21, 1
      %p81 = por %p79, %p80
      %p82 = scmp.ne.s32.totalorder %s73, %s74
      %p83 = scmp.eq.s32.totalorder %s21, 0
      %p84 = por %p82, %p83
      %p85 = scmp.ne.s32.totalorder %s73, %s74
      %p86 = scmp.eq.s32.totalorder %s22, 1
      %p87 = por %p85, %p86
      %p89 = scmp.ne.s32.totalorder %s74, %s88
      %p90 = scmp.eq.s32.totalorder %s22, 0
      %p91 = por %p89, %p90
      %s93 = sadd.s32 %s92, 1
      %p96 = scmp.eq.s32.totalorder %s16, 1
      %p97 = scmp.ne.s32.totalorder %s92, %s94
      %p98 = scmp.eq.s32.totalorder %s16, 0
      %p99 = por %p97, %p98
      %p100 = scmp.ne.s32.totalorder %s92, %s94
      %p101 = scmp.eq.s32.totalorder %s21, 1
      %p102 = por %p100, %p101
      %p103 = scmp.ne.s32.totalorder %s94, %s95
      %p104 = scmp.eq.s32.totalorder %s21, 0
      %p105 = por %p103, %p104
      %p106 = scmp.ne.s32.totalorder %s94, %s95
      %p107 = scmp.eq.s32.totalorder %s22, 1
      %p108 = por %p106, %p107
      %p110 = scmp.ne.s32.totalorder %s95, %s109
      %p111 = scmp.eq.s32.totalorder %s22, 0
      %p112 = por %p110, %p111
      %s114 = sadd.s32 %s113, 1
      %p117 = scmp.eq.s32.totalorder %s16, 1
      %p118 = scmp.ne.s32.totalorder %s113, %s115
      %p119 = scmp.eq.s32.totalorder %s16, 0
      %p120 = por %p118, %p119
      %p121 = scmp.ne.s32.totalorder %s113, %s115
      %p122 = scmp.eq.s32.totalorder %s21, 1
      %p123 = por %p121, %p122
      %p124 = scmp.ne.s32.totalorder %s115, %s116
      %p125 = scmp.eq.s32.totalorder %s21, 0
      %p126 = por %p124, %p125
      %p127 = scmp.ne.s32.totalorder %s115, %s116
      %p128 = scmp.eq.s32.totalorder %s22, 1
      %p129 = por %p127, %p128
      %p131 = scmp.ne.s32.totalorder %s116, %s130
      %p132 = scmp.eq.s32.totalorder %s22, 0
      %p133 = por %p131, %p132
      %s135 = sadd.s32 %s134, 1
      %p138 = scmp.eq.s32.totalorder %s16, 1
      %p139 = scmp.ne.s32.totalorder %s134, %s136
      %p140 = scmp.eq.s32.totalorder %s16, 0
      %p141 = por %p139, %p140
      %p142 = scmp.ne.s32.totalorder %s134, %s136
      %p143 = scmp.eq.s32.totalorder %s21, 1
      %p144 = por %p142, %p143
      %p145 = scmp.ne.s32.totalorder %s136, %s137
      %p146 = scmp.eq.s32.totalorder %s21, 0
      %p147 = por %p145, %p146
      %p148 = scmp.ne.s32.totalorder %s136, %s137
      %p149 = scmp.eq.s32.totalorder %s22, 1
      %p150 = por %p148, %p149
      %p152 = scmp.ne.s32.totalorder %s137, %s151
      %p153 = scmp.eq.s32.totalorder %s22, 0
      %p154 = por %p152, %p153
      %s156 = sadd.s32 %s155, 1
      %p159 = scmp.eq.s32.totalorder %s16, 1
      %p160 = scmp.ne.s32.totalorder %s155, %s157
      %p161 = scmp.eq.s32.totalorder %s16, 0
      %p162 = por %p160, %p161
      %p163 = scmp.ne.s32.totalorder %s155, %s157
      %p164 = scmp.eq.s32.totalorder %s21, 1
      %p165 = por %p163, %p164
      %p166 = scmp.ne.s32.totalorder %s157, %s158
      %p167 = scmp.eq.s32.totalorder %s21, 0
      %p168 = por %p166, %p167
      %p169 = scmp.ne.s32.totalorder %s157, %s158
      %p170 = scmp.eq.s32.totalorder %s22, 1
      %p171 = por %p169, %p170
      %p173 = scmp.ne.s32.totalorder %s158, %s172
      %p174 = scmp.eq.s32.totalorder %s22, 0
      %p175 = por %p173, %p174
      %s176 = ssub.s32 %s16, %s23
      %p177 = scmp.eq.s32.totalorder %s176, 0
      %s179 = sadd.s32 %s178, 1
      %s180 = scalar_select %p177, %s178, %s179
      %p183 = pneg %p177
      %p184 = scmp.eq.s32.totalorder %s16, 1
      %p185 = por %p183, %p184
      %p186 = scmp.ne.s32.totalorder %s178, %s181
      %p187 = scmp.eq.s32.totalorder %s16, 0
      %p188 = por %p186, %p187
      %p189 = scmp.ne.s32.totalorder %s178, %s181
      %p190 = scmp.eq.s32.totalorder %s21, 1
      %p191 = por %p189, %p190
      %p192 = scmp.ne.s32.totalorder %s181, %s182
      %p193 = scmp.eq.s32.totalorder %s21, 0
      %p194 = por %p192, %p193
      %p195 = scmp.ne.s32.totalorder %s181, %s182
      %p196 = scmp.eq.s32.totalorder %s22, 1
      %p197 = por %p195, %p196
      %p199 = scmp.ne.s32.totalorder %s182, %s198
      %p200 = scmp.eq.s32.totalorder %s22, 0
      %p201 = por %p199, %p200
      %p202 = scmp.le.s32.totalorder 1, %s16
      %p203 = scmp.lt.s32.totalorder %s16, 3
      %p204 = pnand %p202, %p203
      %p205 = pneg %p204
      // Predicated region
      $region9: #{tpu_custom_call.1} parent=5 // pred_check
        _
      $region10: #{tpu_custom_call.1} parent=5 // pred_check_branch
        %207 = sbr.rel (%p204) target = $region12
      $region11: #{tpu_custom_call.1} parent=5 // pred_region
        %s208 = ssub.s32 %s16, 1
        // Predicated region
        $region13: #{tpu_custom_call.1} parent=11 // pred_check
          %p209 = pneg %p63
        $region14: #{tpu_custom_call.1} parent=11 // pred_check_branch
          %211 = sbr.rel (%p209) target = $region16
        $region15: #{tpu_custom_call.1} parent=11 // pred_region
          _
        $region16: #{tpu_custom_call.1} parent=11 // pred_fallthru
          _
        // Predicated region
        $region17: #{tpu_custom_call.1} parent=11 // pred_check
          %p212 = pneg %p84
        $region18: #{tpu_custom_call.1} parent=11 // pred_check_branch
          %214 = sbr.rel (%p212) target = $region20
        $region19: #{tpu_custom_call.1} parent=11 // pred_region
          _
        $region20: #{tpu_custom_call.1} parent=11 // pred_fallthru
          _
        // Predicated region
        $region21: #{tpu_custom_call.1} parent=11 // pred_check
          %p215 = pneg %p105
        $region22: #{tpu_custom_call.1} parent=11 // pred_check_branch
          %217 = sbr.rel (%p215) target = $region24
        $region23: #{tpu_custom_call.1} parent=11 // pred_region
          _
        $region24: #{tpu_custom_call.1} parent=11 // pred_fallthru
          _
        // Predicated region
        $region25: #{tpu_custom_call.1} parent=11 // pred_check
          %p218 = pneg %p126
        $region26: #{tpu_custom_call.1} parent=11 // pred_check_branch
          %220 = sbr.rel (%p218) target = $region28
        $region27: #{tpu_custom_call.1} parent=11 // pred_region
          _
        $region28: #{tpu_custom_call.1} parent=11 // pred_fallthru
          _
        // Predicated region
        $region29: #{tpu_custom_call.1} parent=11 // pred_check
          %p221 = pneg %p147
        $region30: #{tpu_custom_call.1} parent=11 // pred_check_branch
          %223 = sbr.rel (%p221) target = $region32
        $region31: #{tpu_custom_call.1} parent=11 // pred_region
          _
        $region32: #{tpu_custom_call.1} parent=11 // pred_fallthru
          _
        // Predicated region
        $region33: #{tpu_custom_call.1} parent=11 // pred_check
          %p224 = pneg %p168
        $region34: #{tpu_custom_call.1} parent=11 // pred_check_branch
          %226 = sbr.rel (%p224) target = $region36
        $region35: #{tpu_custom_call.1} parent=11 // pred_region
          _
        $region36: #{tpu_custom_call.1} parent=11 // pred_fallthru
          _
      $region12: #{tpu_custom_call.1} parent=5 // pred_fallthru
        _
      %p227 = scmp.lt.s32.totalorder %s16, 2
      // Predicated region
      $region37: #{tpu_custom_call.1} parent=5 // pred_check
        %p228 = pneg %p227
      $region38: #{tpu_custom_call.1} parent=5 // pred_check_branch
        %230 = sbr.rel (%p228) target = $region40
      $region39: #{tpu_custom_call.1} parent=5 // pred_region
        // Predicated region
        $region41: #{tpu_custom_call.1} parent=39 // pred_check
          %p231 = pneg %p36
        $region42: #{tpu_custom_call.1} parent=39 // pred_check_branch
          %233 = sbr.rel (%p231) target = $region44
        $region43: #{tpu_custom_call.1} parent=39 // pred_region
          %s234 = smul.u32 8, %s16
          %p235 = scmp.lt.s32.totalorder %s234, 15
          %s236 = scalar_select %p235, %s234, 15
          %s237 = scalar_lea.vmem %s0, %s236
          %s238 = smul.u32 8, %s16
        $region44: #{tpu_custom_call.1} parent=39 // pred_fallthru
          _
      $region40: #{tpu_custom_call.1} parent=5 // pred_fallthru
        _
      %p239 = scmp.le.s32.totalorder 1, %s16
      %p240 = scmp.lt.s32.totalorder %s16, 3
      %p241 = pnand %p239, %p240
      %p242 = pneg %p241
      // Predicated region
      $region45: #{tpu_custom_call.1} parent=5 // pred_check
        _
      $region46: #{tpu_custom_call.1} parent=5 // pred_check_branch
        %244 = sbr.rel (%p241) target = $region48
      $region47: #{tpu_custom_call.1} parent=5 // pred_region
        %s245 = ssub.s32 %s16, 1
        %s246 = smul.u32 8, %s21
        %p247 = scmp.lt.s32.totalorder %s246, 15
        %s248 = scalar_select %p247, %s246, 15
        %s249 = scalar_lea.vmem %s0, %s248
        %p250 = pneg %p42
        %p251 = pneg %p39
        %p252 = pneg %p63
        %p253 = pneg %p60
        %p254 = pneg %p84
        %p255 = pneg %p81
        %p256 = pneg %p105
        %p257 = pneg %p102
        %p258 = pneg %p126
        %p259 = pneg %p123
        %p260 = pneg %p147
        %p261 = pneg %p144
        %p262 = pneg %p168
        %p263 = pneg %p165
        %p264 = pneg %p194
        %p265 = pneg %p191
        %s266 = sand.u32 %s181, 1
        %s267 = scalar_lea.sflag [#allocation3], %s266
        %s268 = sand.u32 %s181, 1
        %s269 = smul.addr %s268, 64
        %s270 = scalar_lea.vmem [#allocation2], %s269
        %s271 = smul.u32 8, %s21
        %p272 = scmp.lt.s32.totalorder %s271, 15
        %s273 = scalar_select %p272, %s271, 15
        %s274 = scalar_lea.vmem %s0, %s273
        %s275 = smul.u32 8, %s21
        %s276 = smul.u32 8, %s21
        %v277 = vld [vmem:[%s274] sm:$0xff]
        %v278 = vld [vmem:[%s1] sm:$0xff]
        %v279 = vld [vmem:[%s1 + $0x8] sm:$0xff]
        %v280 = vld [vmem:[%s1 + $0x10] sm:$0xff]
        %v281 = vld [vmem:[%s1 + $0x18] sm:$0xff]
        %v282 = vld [vmem:[%s2] sm:$0xff]
        %v283 = vld [vmem:[%s2 + $0x8] sm:$0xff]
        %v284 = vld [vmem:[%s2 + $0x10] sm:$0xff]
        %v285 = vld [vmem:[%s2 + $0x18] sm:$0xff]
        %287 = vset.pattern.permute.xlu0 0
        %288 = vperm.xlu0 %287, %v278
        %v289 = vpop.permute.xlu0 %288
        %292 = vset.pattern.permute.xlu0 0
        %293 = vperm.xlu0 %292, %v279
        %v294 = vpop.permute.xlu0 %293
        %297 = vset.pattern.permute.xlu0 0
        %298 = vperm.xlu0 %297, %v280
        %v299 = vpop.permute.xlu0 %298
        %302 = vset.pattern.permute.xlu0 0
        %303 = vperm.xlu0 %302, %v281
        %v304 = vpop.permute.xlu0 %303
        %v307 = vlaneseq
        %v308 = vshrl.u32 %v307, 7
        %v309 = vsub.s32 0, %v308
        %v310 = vrot.slane %v277, %v309
        %v311 = vlaneseq
        %v312 = vshrl.u32 %v311, 7
        %v313 = vsub.s32 1, %v312
        %v314 = vrot.slane %v277, %v313
        %v315 = vlaneseq
        %v316 = vshrl.u32 %v315, 7
        %v317 = vsub.s32 2, %v316
        %v318 = vrot.slane %v277, %v317
        %v319 = vlaneseq
        %v320 = vshrl.u32 %v319, 7
        %v321 = vsub.s32 3, %v320
        %v322 = vrot.slane %v277, %v321
        %v323 = vlaneseq
        %v324 = vshrl.u32 %v323, 7
        %v325 = vsub.s32 4, %v324
        %v326 = vrot.slane %v277, %v325
        %v327 = vlaneseq
        %v328 = vshrl.u32 %v327, 7
        %v329 = vsub.s32 5, %v328
        %v330 = vrot.slane %v277, %v329
        %v331 = vlaneseq
        %v332 = vshrl.u32 %v331, 7
        %v333 = vsub.s32 6, %v332
        %v334 = vrot.slane %v277, %v333
        %v335 = vlaneseq
        %v336 = vshrl.u32 %v335, 7
        %v337 = vsub.s32 7, %v336
        %v338 = vrot.slane %v277, %v337
        %v347 = vmul.f32 %v289, %v310
        %v348 = vmul.f32 %v289, %v314
        %v349 = vmul.f32 %v289, %v318
        %v350 = vmul.f32 %v289, %v322
        %v351 = vmul.f32 %v289, %v326
        %v352 = vmul.f32 %v289, %v330
        %v353 = vmul.f32 %v289, %v334
        %v354 = vmul.f32 %v289, %v338
        %v355 = vmul.f32 %v294, %v310
        %v356 = vmul.f32 %v294, %v314
        %v357 = vmul.f32 %v294, %v318
        %v358 = vmul.f32 %v294, %v322
        %v359 = vmul.f32 %v294, %v326
        %v360 = vmul.f32 %v294, %v330
        %v361 = vmul.f32 %v294, %v334
        %v362 = vmul.f32 %v294, %v338
        %v363 = vmul.f32 %v299, %v310
        %v364 = vmul.f32 %v299, %v314
        %v365 = vmul.f32 %v299, %v318
        %v366 = vmul.f32 %v299, %v322
        %v367 = vmul.f32 %v299, %v326
        %v368 = vmul.f32 %v299, %v330
        %v369 = vmul.f32 %v299, %v334
        %v370 = vmul.f32 %v299, %v338
        %v371 = vmul.f32 %v304, %v310
        %v372 = vmul.f32 %v304, %v314
        %v373 = vmul.f32 %v304, %v318
        %v374 = vmul.f32 %v304, %v322
        %v375 = vmul.f32 %v304, %v326
        %v376 = vmul.f32 %v304, %v330
        %v377 = vmul.f32 %v304, %v334
        %v378 = vmul.f32 %v304, %v338
        %380 = vset.pattern.permute.xlu0 0
        %381 = vperm.xlu0 %380, %v282
        %v382 = vpop.permute.xlu0 %381
        %385 = vset.pattern.permute.xlu0 0
        %386 = vperm.xlu0 %385, %v283
        %v387 = vpop.permute.xlu0 %386
        %390 = vset.pattern.permute.xlu0 0
        %391 = vperm.xlu0 %390, %v284
        %v392 = vpop.permute.xlu0 %391
        %395 = vset.pattern.permute.xlu0 0
        %396 = vperm.xlu0 %395, %v285
        %v397 = vpop.permute.xlu0 %396
        %v399 = vadd.f32 %v347, %v382
        %v400 = vadd.f32 %v348, %v382
        %v401 = vadd.f32 %v349, %v382
        %v402 = vadd.f32 %v350, %v382
        %v403 = vadd.f32 %v351, %v382
        %v404 = vadd.f32 %v352, %v382
        %v405 = vadd.f32 %v353, %v382
        %v406 = vadd.f32 %v354, %v382
        %v407 = vadd.f32 %v355, %v387
        %v408 = vadd.f32 %v356, %v387
        %v409 = vadd.f32 %v357, %v387
        %v410 = vadd.f32 %v358, %v387
        %v411 = vadd.f32 %v359, %v387
        %v412 = vadd.f32 %v360, %v387
        %v413 = vadd.f32 %v361, %v387
        %v414 = vadd.f32 %v362, %v387
        %v415 = vadd.f32 %v363, %v392
        %v416 = vadd.f32 %v364, %v392
        %v417 = vadd.f32 %v365, %v392
        %v418 = vadd.f32 %v366, %v392
        %v419 = vadd.f32 %v367, %v392
        %v420 = vadd.f32 %v368, %v392
        %v421 = vadd.f32 %v369, %v392
        %v422 = vadd.f32 %v370, %v392
        %v423 = vadd.f32 %v371, %v397
        %v424 = vadd.f32 %v372, %v397
        %v425 = vadd.f32 %v373, %v397
        %v426 = vadd.f32 %v374, %v397
        %v427 = vadd.f32 %v375, %v397
        %v428 = vadd.f32 %v376, %v397
        %v429 = vadd.f32 %v377, %v397
        %v430 = vadd.f32 %v378, %v397
        %v431 = vtanh.pop %v399
        %v432 = vtanh.pop %v400
        %v433 = vtanh.pop %v401
        %v434 = vtanh.pop %v402
        %v435 = vtanh.pop %v403
        %v436 = vtanh.pop %v404
        %v437 = vtanh.pop %v405
        %v438 = vtanh.pop %v406
        %v439 = vtanh.pop %v407
        %v440 = vtanh.pop %v408
        %v441 = vtanh.pop %v409
        %v442 = vtanh.pop %v410
        %v443 = vtanh.pop %v411
        %v444 = vtanh.pop %v412
        %v445 = vtanh.pop %v413
        %v446 = vtanh.pop %v414
        %v447 = vtanh.pop %v415
        %v448 = vtanh.pop %v416
        %v449 = vtanh.pop %v417
        %v450 = vtanh.pop %v418
        %v451 = vtanh.pop %v419
        %v452 = vtanh.pop %v420
        %v453 = vtanh.pop %v421
        %v454 = vtanh.pop %v422
        %v455 = vtanh.pop %v423
        %v456 = vtanh.pop %v424
        %v457 = vtanh.pop %v425
        %v458 = vtanh.pop %v426
        %v459 = vtanh.pop %v427
        %v460 = vtanh.pop %v428
        %v461 = vtanh.pop %v429
        %v462 = vtanh.pop %v430
        %v463 = vld [vmem:[%s3] sm:$0xff]
        %v464 = vld [vmem:[%s3 + $0x8] sm:$0xff]
        %v465 = vld [vmem:[%s3 + $0x10] sm:$0xff]
        %v466 = vld [vmem:[%s3 + $0x18] sm:$0xff]
        %v467 = vld [vmem:[%s4] sm:$0xff]
        %v468 = vld [vmem:[%s4 + $0x8] sm:$0xff]
        %v469 = vld [vmem:[%s4 + $0x10] sm:$0xff]
        %v470 = vld [vmem:[%s4 + $0x18] sm:$0xff]
        %472 = vset.pattern.permute.xlu0 0
        %473 = vperm.xlu0 %472, %v467
        %v474 = vpop.permute.xlu0 %473
        %477 = vset.pattern.permute.xlu0 0
        %478 = vperm.xlu0 %477, %v468
        %v479 = vpop.permute.xlu0 %478
        %482 = vset.pattern.permute.xlu0 0
        %483 = vperm.xlu0 %482, %v469
        %v484 = vpop.permute.xlu0 %483
        %487 = vset.pattern.permute.xlu0 0
        %488 = vperm.xlu0 %487, %v470
        %v489 = vpop.permute.xlu0 %488
        %vm491 = vcmask 261120
        %v493 = vsel %vm491, %v463, 0
        %v496 = vsel %vm491, %v464, 0
        %v499 = vsel %vm491, %v465, 0
        %v502 = vsel %vm491, %v466, 0
        %504 = vmatprep.subr.mxu0 %v432
        %505 = vmatpush1.msra.mxu0 %v431
        %506 = vmatprep.subr.mxu0 %v440
        %507 = vmatpush1.msra.mxu0 %v439
        %508 = vmatprep.subr.mxu0 %v448
        %509 = vmatpush1.msra.mxu0 %v447
        %510 = vmatprep.subr.mxu0 %v456
        %511 = vmatpush1.msra.mxu0 %v455
        %512 = vmatprep.subr.mxu0 0.0
        %513 = vmatpush1.msra.mxu0 0.0
        %514 = vmatprep.subr.mxu0 0.0
        %515 = vmatpush1.msra.mxu0 0.0
        %516 = vmatprep.subr.mxu0 0.0
        %517 = vmatpush1.msra.mxu0 0.0
        %518 = vmatprep.subr.mxu0 0.0
        %519 = vmatpush1.msra.mxu0 0.0
        %520 = vmatprep.subr.mxu0 0.0
        %521 = vmatpush1.msra.mxu0 0.0
        %522 = vmatprep.subr.mxu0 0.0
        %523 = vmatpush1.msra.mxu0 0.0
        %524 = vmatprep.subr.mxu0 0.0
        %525 = vmatpush1.msra.mxu0 0.0
        %526 = vmatprep.subr.mxu0 0.0
        %527 = vmatpush1.msra.mxu0 0.0
        %528 = vmatprep.subr.mxu0 0.0
        %529 = vmatpush1.msra.mxu0 0.0
        %530 = vmatprep.subr.mxu0 0.0
        %531 = vmatpush1.msra.mxu0 0.0
        %532 = vmatprep.subr.mxu0 0.0
        %533 = vmatpush1.msra.mxu0 0.0
        %534 = vmatprep.subr.mxu0 0.0
        %535 = vmatpush1.msra.mxu0 0.0
        %536 = vmatprep.subr.mxu0 0.0
        %537 = vmatpush1.msra.mxu0 0.0
        %538 = vmatprep.subr.mxu0 0.0
        %539 = vmatpush1.msra.mxu0 0.0
        %540 = vmatprep.subr.mxu0 0.0
        %541 = vmatpush1.msra.mxu0 0.0
        %542 = vmatprep.subr.mxu0 0.0
        %543 = vmatpush1.msra.mxu0 0.0
        %544 = vmatprep.subr.mxu0 0.0
        %545 = vmatpush1.msra.mxu0 0.0
        %546 = vmatprep.subr.mxu0 0.0
        %547 = vmatpush1.msra.mxu0 0.0
        %548 = vmatprep.subr.mxu0 0.0
        %549 = vmatpush1.msra.mxu0 0.0
        %550 = vmatprep.subr.mxu0 0.0
        %551 = vmatpush1.msra.mxu0 0.0
        %552 = vmatprep.subr.mxu0 0.0
        %553 = vmatpush1.msra.mxu0 0.0
        %554 = vmatprep.subr.mxu0 0.0
        %555 = vmatpush1.msra.mxu0 0.0
        %556 = vmatprep.subr.mxu0 0.0
        %557 = vmatpush1.msra.mxu0 0.0
        %558 = vmatprep.subr.mxu0 0.0
        %559 = vmatpush1.msra.mxu0 0.0
        %560 = vmatprep.subr.mxu0 0.0
        %561 = vmatpush1.msra.mxu0 0.0
        %562 = vmatprep.subr.mxu0 0.0
        %563 = vmatpush1.msra.mxu0 0.0
        %564 = vmatprep.subr.mxu0 0.0
        %565 = vmatpush1.msra.mxu0 0.0
        %566 = vmatprep.subr.mxu0 0.0
        %567 = vmatpush1.msra.mxu0 0.0
        %568 = vmatprep.mubr.f32.mxu0 0.0
        %569 = vmatmul.mubr.f32.gmra.mrb[0].mxu0 %v493
        %v570 = vpop.f32.mrb[0].mxu0
        %v571 = vadd.f32 %v474, %v570
        %v572 = vpop.f32.mrb[0].mxu0
        %v573 = vadd.f32 %v474, %v572
        %574 = vmatprep.mubr.f32.mxu0 0.0
        %575 = vmatmul.mubr.f32.gmra.mrb[0].mxu0 %v496
        %v576 = vpop.f32.mrb[0].mxu0
        %v577 = vadd.f32 %v479, %v576
        %v578 = vpop.f32.mrb[0].mxu0
        %v579 = vadd.f32 %v479, %v578
        %580 = vmatprep.mubr.f32.mxu0 0.0
        %581 = vmatmul.mubr.f32.gmra.mrb[0].mxu0 %v499
        %v582 = vpop.f32.mrb[0].mxu0
        %v583 = vadd.f32 %v484, %v582
        %v584 = vpop.f32.mrb[0].mxu0
        %v585 = vadd.f32 %v484, %v584
        %586 = vmatprep.mubr.f32.mxu0 0.0
        %587 = vmatmul.mubr.f32.gmra.mrb[0].mxu0 %v502
        %v588 = vpop.f32.mrb[0].mxu0
        %v589 = vadd.f32 %v489, %v588
        %v590 = vpop.f32.mrb[0].mxu0
        %v591 = vadd.f32 %v489, %v590
        %592 = vdwg.mxu0
        %593 = vmatprep.subr.mxu0 %v434
        %594 = vmatpush1.msra.mxu0 %v433
        %595 = vmatprep.subr.mxu0 %v442
        %596 = vmatpush1.msra.mxu0 %v441
        %597 = vmatprep.subr.mxu0 %v450
        %598 = vmatpush1.msra.mxu0 %v449
        %599 = vmatprep.subr.mxu0 %v458
        %600 = vmatpush1.msra.mxu0 %v457
        %601 = vmatprep.subr.mxu0 0.0
        %602 = vmatpush1.msra.mxu0 0.0
        %603 = vmatprep.subr.mxu0 0.0
        %604 = vmatpush1.msra.mxu0 0.0
        %605 = vmatprep.subr.mxu0 0.0
        %606 = vmatpush1.msra.mxu0 0.0
        %607 = vmatprep.subr.mxu0 0.0
        %608 = vmatpush1.msra.mxu0 0.0
        %609 = vmatprep.subr.mxu0 0.0
        %610 = vmatpush1.msra.mxu0 0.0
        %611 = vmatprep.subr.mxu0 0.0
        %612 = vmatpush1.msra.mxu0 0.0
        %613 = vmatprep.subr.mxu0 0.0
        %614 = vmatpush1.msra.mxu0 0.0
        %615 = vmatprep.subr.mxu0 0.0
        %616 = vmatpush1.msra.mxu0 0.0
        %617 = vmatprep.subr.mxu0 0.0
        %618 = vmatpush1.msra.mxu0 0.0
        %619 = vmatprep.subr.mxu0 0.0
        %620 = vmatpush1.msra.mxu0 0.0
        %621 = vmatprep.subr.mxu0 0.0
        %622 = vmatpush1.msra.mxu0 0.0
        %623 = vmatprep.subr.mxu0 0.0
        %624 = vmatpush1.msra.mxu0 0.0
        %625 = vmatprep.subr.mxu0 0.0
        %626 = vmatpush1.msra.mxu0 0.0
        %627 = vmatprep.subr.mxu0 0.0
        %628 = vmatpush1.msra.mxu0 0.0
        %629 = vmatprep.subr.mxu0 0.0
        %630 = vmatpush1.msra.mxu0 0.0
        %631 = vmatprep.subr.mxu0 0.0
        %632 = vmatpush1.msra.mxu0 0.0
        %633 = vmatprep.subr.mxu0 0.0
        %634 = vmatpush1.msra.mxu0 0.0
        %635 = vmatprep.subr.mxu0 0.0
        %636 = vmatpush1.msra.mxu0 0.0
        %637 = vmatprep.subr.mxu0 0.0
        %638 = vmatpush1.msra.mxu0 0.0
        %639 = vmatprep.subr.mxu0 0.0
        %640 = vmatpush1.msra.mxu0 0.0
        %641 = vmatprep.subr.mxu0 0.0
        %642 = vmatpush1.msra.mxu0 0.0
        %643 = vmatprep.subr.mxu0 0.0
        %644 = vmatpush1.msra.mxu0 0.0
        %645 = vmatprep.subr.mxu0 0.0
        %646 = vmatpush1.msra.mxu0 0.0
        %647 = vmatprep.subr.mxu0 0.0
        %648 = vmatpush1.msra.mxu0 0.0
        %649 = vmatprep.subr.mxu0 0.0
        %650 = vmatpush1.msra.mxu0 0.0
        %651 = vmatprep.subr.mxu0 0.0
        %652 = vmatpush1.msra.mxu0 0.0
        %653 = vmatprep.subr.mxu0 0.0
        %654 = vmatpush1.msra.mxu0 0.0
        %655 = vmatprep.subr.mxu0 0.0
        %656 = vmatpush1.msra.mxu0 0.0
        %657 = vmatprep.mubr.f32.mxu0 0.0
        %658 = vmatmul.mubr.f32.gmra.mrb[0].mxu0 %v493
        %v659 = vpop.f32.mrb[0].mxu0
        %v660 = vadd.f32 %v474, %v659
        %v661 = vpop.f32.mrb[0].mxu0
        %v662 = vadd.f32 %v474, %v661
        %663 = vmatprep.mubr.f32.mxu0 0.0
        %664 = vmatmul.mubr.f32.gmra.mrb[0].mxu0 %v496
        %v665 = vpop.f32.mrb[0].mxu0
        %v666 = vadd.f32 %v479, %v665
        %v667 = vpop.f32.mrb[0].mxu0
        %v668 = vadd.f32 %v479, %v667
        %669 = vmatprep.mubr.f32.mxu0 0.0
        %670 = vmatmul.mubr.f32.gmra.mrb[0].mxu0 %v499
        %v671 = vpop.f32.mrb[0].mxu0
        %v672 = vadd.f32 %v484, %v671
        %v673 = vpop.f32.mrb[0].mxu0
        %v674 = vadd.f32 %v484, %v673
        %675 = vmatprep.mubr.f32.mxu0 0.0
        %676 = vmatmul.mubr.f32.gmra.mrb[0].mxu0 %v502
        %v677 = vpop.f32.mrb[0].mxu0
        %v678 = vadd.f32 %v489, %v677
        %v679 = vpop.f32.mrb[0].mxu0
        %v680 = vadd.f32 %v489, %v679
        %681 = vdwg.mxu0
        %682 = vmatprep.subr.mxu0 %v436
        %683 = vmatpush1.msra.mxu0 %v435
        %684 = vmatprep.subr.mxu0 %v444
        %685 = vmatpush1.msra.mxu0 %v443
        %686 = vmatprep.subr.mxu0 %v452
        %687 = vmatpush1.msra.mxu0 %v451
        %688 = vmatprep.subr.mxu0 %v460
        %689 = vmatpush1.msra.mxu0 %v459
        %690 = vmatprep.subr.mxu0 0.0
        %691 = vmatpush1.msra.mxu0 0.0
        %692 = vmatprep.subr.mxu0 0.0
        %693 = vmatpush1.msra.mxu0 0.0
        %694 = vmatprep.subr.mxu0 0.0
        %695 = vmatpush1.msra.mxu0 0.0
        %696 = vmatprep.subr.mxu0 0.0
        %697 = vmatpush1.msra.mxu0 0.0
        %698 = vmatprep.subr.mxu0 0.0
        %699 = vmatpush1.msra.mxu0 0.0
        %700 = vmatprep.subr.mxu0 0.0
        %701 = vmatpush1.msra.mxu0 0.0
        %702 = vmatprep.subr.mxu0 0.0
        %703 = vmatpush1.msra.mxu0 0.0
        %704 = vmatprep.subr.mxu0 0.0
        %705 = vmatpush1.msra.mxu0 0.0
        %706 = vmatprep.subr.mxu0 0.0
        %707 = vmatpush1.msra.mxu0 0.0
        %708 = vmatprep.subr.mxu0 0.0
        %709 = vmatpush1.msra.mxu0 0.0
        %710 = vmatprep.subr.mxu0 0.0
        %711 = vmatpush1.msra.mxu0 0.0
        %712 = vmatprep.subr.mxu0 0.0
        %713 = vmatpush1.msra.mxu0 0.0
        %714 = vmatprep.subr.mxu0 0.0
        %715 = vmatpush1.msra.mxu0 0.0
        %716 = vmatprep.subr.mxu0 0.0
        %717 = vmatpush1.msra.mxu0 0.0
        %718 = vmatprep.subr.mxu0 0.0
        %719 = vmatpush1.msra.mxu0 0.0
        %720 = vmatprep.subr.mxu0 0.0
        %721 = vmatpush1.msra.mxu0 0.0
        %722 = vmatprep.subr.mxu0 0.0
        %723 = vmatpush1.msra.mxu0 0.0
        %724 = vmatprep.subr.mxu0 0.0
        %725 = vmatpush1.msra.mxu0 0.0
        %726 = vmatprep.subr.mxu0 0.0
        %727 = vmatpush1.msra.mxu0 0.0
        %728 = vmatprep.subr.mxu0 0.0
        %729 = vmatpush1.msra.mxu0 0.0
        %730 = vmatprep.subr.mxu0 0.0
        %731 = vmatpush1.msra.mxu0 0.0
        %732 = vmatprep.subr.mxu0 0.0
        %733 = vmatpush1.msra.mxu0 0.0
        %734 = vmatprep.subr.mxu0 0.0
        %735 = vmatpush1.msra.mxu0 0.0
        %736 = vmatprep.subr.mxu0 0.0
        %737 = vmatpush1.msra.mxu0 0.0
        %738 = vmatprep.subr.mxu0 0.0
        %739 = vmatpush1.msra.mxu0 0.0
        %740 = vmatprep.subr.mxu0 0.0
        %741 = vmatpush1.msra.mxu0 0.0
        %742 = vmatprep.subr.mxu0 0.0
        %743 = vmatpush1.msra.mxu0 0.0
        %744 = vmatprep.subr.mxu0 0.0
        %745 = vmatpush1.msra.mxu0 0.0
        %746 = vmatprep.mubr.f32.mxu0 0.0
        %747 = vmatmul.mubr.f32.gmra.mrb[0].mxu0 %v493
        %v748 = vpop.f32.mrb[0].mxu0
        %v749 = vadd.f32 %v474, %v748
        %v750 = vpop.f32.mrb[0].mxu0
        %v751 = vadd.f32 %v474, %v750
        %752 = vmatprep.mubr.f32.mxu0 0.0
        %753 = vmatmul.mubr.f32.gmra.mrb[0].mxu0 %v496
        %v754 = vpop.f32.mrb[0].mxu0
        %v755 = vadd.f32 %v479, %v754
        %v756 = vpop.f32.mrb[0].mxu0
        %v757 = vadd.f32 %v479, %v756
        %758 = vmatprep.mubr.f32.mxu0 0.0
        %759 = vmatmul.mubr.f32.gmra.mrb[0].mxu0 %v499
        %v760 = vpop.f32.mrb[0].mxu0
        %v761 = vadd.f32 %v484, %v760
        %v762 = vpop.f32.mrb[0].mxu0
        %v763 = vadd.f32 %v484, %v762
        %764 = vmatprep.mubr.f32.mxu0 0.0
        %765 = vmatmul.mubr.f32.gmra.mrb[0].mxu0 %v502
        %v766 = vpop.f32.mrb[0].mxu0
        %v767 = vadd.f32 %v489, %v766
        %v768 = vpop.f32.mrb[0].mxu0
        %v769 = vadd.f32 %v489, %v768
        %770 = vdwg.mxu0
        %771 = vmatprep.subr.mxu0 %v438
        %772 = vmatpush1.msra.mxu0 %v437
        %773 = vmatprep.subr.mxu0 %v446
        %774 = vmatpush1.msra.mxu0 %v445
        %775 = vmatprep.subr.mxu0 %v454
        %776 = vmatpush1.msra.mxu0 %v453
        %777 = vmatprep.subr.mxu0 %v462
        %778 = vmatpush1.msra.mxu0 %v461
        %779 = vmatprep.subr.mxu0 0.0
        %780 = vmatpush1.msra.mxu0 0.0
        %781 = vmatprep.subr.mxu0 0.0
        %782 = vmatpush1.msra.mxu0 0.0
        %783 = vmatprep.subr.mxu0 0.0
        %784 = vmatpush1.msra.mxu0 0.0
        %785 = vmatprep.subr.mxu0 0.0
        %786 = vmatpush1.msra.mxu0 0.0
        %787 = vmatprep.subr.mxu0 0.0
        %788 = vmatpush1.msra.mxu0 0.0
        %789 = vmatprep.subr.mxu0 0.0
        %790 = vmatpush1.msra.mxu0 0.0
        %791 = vmatprep.subr.mxu0 0.0
        %792 = vmatpush1.msra.mxu0 0.0
        %793 = vmatprep.subr.mxu0 0.0
        %794 = vmatpush1.msra.mxu0 0.0
        %795 = vmatprep.subr.mxu0 0.0
        %796 = vmatpush1.msra.mxu0 0.0
        %797 = vmatprep.subr.mxu0 0.0
        %798 = vmatpush1.msra.mxu0 0.0
        %799 = vmatprep.subr.mxu0 0.0
        %800 = vmatpush1.msra.mxu0 0.0
        %801 = vmatprep.subr.mxu0 0.0
        %802 = vmatpush1.msra.mxu0 0.0
        %803 = vmatprep.subr.mxu0 0.0
        %804 = vmatpush1.msra.mxu0 0.0
        %805 = vmatprep.subr.mxu0 0.0
        %806 = vmatpush1.msra.mxu0 0.0
        %807 = vmatprep.subr.mxu0 0.0
        %808 = vmatpush1.msra.mxu0 0.0
        %809 = vmatprep.subr.mxu0 0.0
        %810 = vmatpush1.msra.mxu0 0.0
        %811 = vmatprep.subr.mxu0 0.0
        %812 = vmatpush1.msra.mxu0 0.0
        %813 = vmatprep.subr.mxu0 0.0
        %814 = vmatpush1.msra.mxu0 0.0
        %815 = vmatprep.subr.mxu0 0.0
        %816 = vmatpush1.msra.mxu0 0.0
        %817 = vmatprep.subr.mxu0 0.0
        %818 = vmatpush1.msra.mxu0 0.0
        %819 = vmatprep.subr.mxu0 0.0
        %820 = vmatpush1.msra.mxu0 0.0
        %821 = vmatprep.subr.mxu0 0.0
        %822 = vmatpush1.msra.mxu0 0.0
        %823 = vmatprep.subr.mxu0 0.0
        %824 = vmatpush1.msra.mxu0 0.0
        %825 = vmatprep.subr.mxu0 0.0
        %826 = vmatpush1.msra.mxu0 0.0
        %827 = vmatprep.subr.mxu0 0.0
        %828 = vmatpush1.msra.mxu0 0.0
        %829 = vmatprep.subr.mxu0 0.0
        %830 = vmatpush1.msra.mxu0 0.0
        %831 = vmatprep.subr.mxu0 0.0
        %832 = vmatpush1.msra.mxu0 0.0
        %833 = vmatprep.subr.mxu0 0.0
        %834 = vmatpush1.msra.mxu0 0.0
        %835 = vmatprep.mubr.f32.mxu0 0.0
        %836 = vmatmul.mubr.f32.gmra.mrb[0].mxu0 %v493
        %v837 = vpop.f32.mrb[0].mxu0
        %v838 = vadd.f32 %v474, %v837
        %v839 = vpop.f32.mrb[0].mxu0
        %v840 = vadd.f32 %v474, %v839
        %841 = vmatprep.mubr.f32.mxu0 0.0
        %842 = vmatmul.mubr.f32.gmra.mrb[0].mxu0 %v496
        %v843 = vpop.f32.mrb[0].mxu0
        %v844 = vadd.f32 %v479, %v843
        %v845 = vpop.f32.mrb[0].mxu0
        %v846 = vadd.f32 %v479, %v845
        %847 = vmatprep.mubr.f32.mxu0 0.0
        %848 = vmatmul.mubr.f32.gmra.mrb[0].mxu0 %v499
        %v849 = vpop.f32.mrb[0].mxu0
        %v850 = vadd.f32 %v484, %v849
        %v851 = vpop.f32.mrb[0].mxu0
        %v852 = vadd.f32 %v484, %v851
        %853 = vmatprep.mubr.f32.mxu0 0.0
        %854 = vmatmul.mubr.f32.gmra.mrb[0].mxu0 %v502
        %v855 = vpop.f32.mrb[0].mxu0
        %v856 = vadd.f32 %v489, %v855
        %v857 = vpop.f32.mrb[0].mxu0
        %v858 = vadd.f32 %v489, %v857
        %859 = vdwg.mxu0
        %v860 = vtanh.pop %v571
        %v861 = vtanh.pop %v573
        %v862 = vtanh.pop %v660
        %v863 = vtanh.pop %v662
        %v864 = vtanh.pop %v749
        %v865 = vtanh.pop %v751
        %v866 = vtanh.pop %v838
        %v867 = vtanh.pop %v840
        %v868 = vtanh.pop %v577
        %v869 = vtanh.pop %v579
        %v870 = vtanh.pop %v666
        %v871 = vtanh.pop %v668
        %v872 = vtanh.pop %v755
        %v873 = vtanh.pop %v757
        %v874 = vtanh.pop %v844
        %v875 = vtanh.pop %v846
        %v876 = vtanh.pop %v583
        %v877 = vtanh.pop %v585
        %v878 = vtanh.pop %v672
        %v879 = vtanh.pop %v674
        %v880 = vtanh.pop %v761
        %v881 = vtanh.pop %v763
        %v882 = vtanh.pop %v850
        %v883 = vtanh.pop %v852
        %v884 = vtanh.pop %v589
        %v885 = vtanh.pop %v591
        %v886 = vtanh.pop %v678
        %v887 = vtanh.pop %v680
        %v888 = vtanh.pop %v767
        %v889 = vtanh.pop %v769
        %v890 = vtanh.pop %v856
        %v891 = vtanh.pop %v858
        %v892 = vld [vmem:[%s5] sm:$0xff]
        %v893 = vld [vmem:[%s6] sm:$0xff]
        %895 = vset.pattern.permute.xlu0 0
        %896 = vperm.xlu0 %895, %v893
        %v897 = vpop.permute.xlu0 %896
        %v900 = vsel %vm491, %v892, 0
        %902 = vmatprep.subr.mxu0 %v861
        %903 = vmatpush1.msra.mxu0 %v860
        %904 = vmatprep.subr.mxu0 %v869
        %905 = vmatpush1.msra.mxu0 %v868
        %906 = vmatprep.subr.mxu0 %v877
        %907 = vmatpush1.msra.mxu0 %v876
        %908 = vmatprep.subr.mxu0 %v885
        %909 = vmatpush1.msra.mxu0 %v884
        %910 = vmatprep.subr.mxu0 0.0
        %911 = vmatpush1.msra.mxu0 0.0
        %912 = vmatprep.subr.mxu0 0.0
        %913 = vmatpush1.msra.mxu0 0.0
        %914 = vmatprep.subr.mxu0 0.0
        %915 = vmatpush1.msra.mxu0 0.0
        %916 = vmatprep.subr.mxu0 0.0
        %917 = vmatpush1.msra.mxu0 0.0
        %918 = vmatprep.subr.mxu0 0.0
        %919 = vmatpush1.msra.mxu0 0.0
        %920 = vmatprep.subr.mxu0 0.0
        %921 = vmatpush1.msra.mxu0 0.0
        %922 = vmatprep.subr.mxu0 0.0
        %923 = vmatpush1.msra.mxu0 0.0
        %924 = vmatprep.subr.mxu0 0.0
        %925 = vmatpush1.msra.mxu0 0.0
        %926 = vmatprep.subr.mxu0 0.0
        %927 = vmatpush1.msra.mxu0 0.0
        %928 = vmatprep.subr.mxu0 0.0
        %929 = vmatpush1.msra.mxu0 0.0
        %930 = vmatprep.subr.mxu0 0.0
        %931 = vmatpush1.msra.mxu0 0.0
        %932 = vmatprep.subr.mxu0 0.0
        %933 = vmatpush1.msra.mxu0 0.0
        %934 = vmatprep.subr.mxu0 0.0
        %935 = vmatpush1.msra.mxu0 0.0
        %936 = vmatprep.subr.mxu0 0.0
        %937 = vmatpush1.msra.mxu0 0.0
        %938 = vmatprep.subr.mxu0 0.0
        %939 = vmatpush1.msra.mxu0 0.0
        %940 = vmatprep.subr.mxu0 0.0
        %941 = vmatpush1.msra.mxu0 0.0
        %942 = vmatprep.subr.mxu0 0.0
        %943 = vmatpush1.msra.mxu0 0.0
        %944 = vmatprep.subr.mxu0 0.0
        %945 = vmatpush1.msra.mxu0 0.0
        %946 = vmatprep.subr.mxu0 0.0
        %947 = vmatpush1.msra.mxu0 0.0
        %948 = vmatprep.subr.mxu0 0.0
        %949 = vmatpush1.msra.mxu0 0.0
        %950 = vmatprep.subr.mxu0 0.0
        %951 = vmatpush1.msra.mxu0 0.0
        %952 = vmatprep.subr.mxu0 0.0
        %953 = vmatpush1.msra.mxu0 0.0
        %954 = vmatprep.subr.mxu0 0.0
        %955 = vmatpush1.msra.mxu0 0.0
        %956 = vmatprep.subr.mxu0 0.0
        %957 = vmatpush1.msra.mxu0 0.0
        %958 = vmatprep.subr.mxu0 0.0
        %959 = vmatpush1.msra.mxu0 0.0
        %960 = vmatprep.subr.mxu0 0.0
        %961 = vmatpush1.msra.mxu0 0.0
        %962 = vmatprep.subr.mxu0 0.0
        %963 = vmatpush1.msra.mxu0 0.0
        %964 = vmatprep.subr.mxu0 0.0
        %965 = vmatpush1.msra.mxu0 0.0
        %966 = vmatprep.mubr.f32.mxu0 0.0
        %967 = vmatmul.mubr.f32.gmra.mrb[0].mxu0 %v900
        %v968 = vpop.f32.mrb[0].mxu0
        %v969 = vadd.f32 %v897, %v968
        %v970 = vpop.f32.mrb[0].mxu0
        %v971 = vadd.f32 %v897, %v970
        %972 = vdwg.mxu0
        %973 = vmatprep.subr.mxu0 %v863
        %974 = vmatpush1.msra.mxu0 %v862
        %975 = vmatprep.subr.mxu0 %v871
        %976 = vmatpush1.msra.mxu0 %v870
        %977 = vmatprep.subr.mxu0 %v879
        %978 = vmatpush1.msra.mxu0 %v878
        %979 = vmatprep.subr.mxu0 %v887
        %980 = vmatpush1.msra.mxu0 %v886
        %981 = vmatprep.subr.mxu0 0.0
        %982 = vmatpush1.msra.mxu0 0.0
        %983 = vmatprep.subr.mxu0 0.0
        %984 = vmatpush1.msra.mxu0 0.0
        %985 = vmatprep.subr.mxu0 0.0
        %986 = vmatpush1.msra.mxu0 0.0
        %987 = vmatprep.subr.mxu0 0.0
        %988 = vmatpush1.msra.mxu0 0.0
        %989 = vmatprep.subr.mxu0 0.0
        %990 = vmatpush1.msra.mxu0 0.0
        %991 = vmatprep.subr.mxu0 0.0
        %992 = vmatpush1.msra.mxu0 0.0
        %993 = vmatprep.subr.mxu0 0.0
        %994 = vmatpush1.msra.mxu0 0.0
        %995 = vmatprep.subr.mxu0 0.0
        %996 = vmatpush1.msra.mxu0 0.0
        %997 = vmatprep.subr.mxu0 0.0
        %998 = vmatpush1.msra.mxu0 0.0
        %999 = vmatprep.subr.mxu0 0.0
        %1000 = vmatpush1.msra.mxu0 0.0
        %1001 = vmatprep.subr.mxu0 0.0
        %1002 = vmatpush1.msra.mxu0 0.0
        %1003 = vmatprep.subr.mxu0 0.0
        %1004 = vmatpush1.msra.mxu0 0.0
        %1005 = vmatprep.subr.mxu0 0.0
        %1006 = vmatpush1.msra.mxu0 0.0
        %1007 = vmatprep.subr.mxu0 0.0
        %1008 = vmatpush1.msra.mxu0 0.0
        %1009 = vmatprep.subr.mxu0 0.0
        %1010 = vmatpush1.msra.mxu0 0.0
        %1011 = vmatprep.subr.mxu0 0.0
        %1012 = vmatpush1.msra.mxu0 0.0
        %1013 = vmatprep.subr.mxu0 0.0
        %1014 = vmatpush1.msra.mxu0 0.0
        %1015 = vmatprep.subr.mxu0 0.0
        %1016 = vmatpush1.msra.mxu0 0.0
        %1017 = vmatprep.subr.mxu0 0.0
        %1018 = vmatpush1.msra.mxu0 0.0
        %1019 = vmatprep.subr.mxu0 0.0
        %1020 = vmatpush1.msra.mxu0 0.0
        %1021 = vmatprep.subr.mxu0 0.0
        %1022 = vmatpush1.msra.mxu0 0.0
        %1023 = vmatprep.subr.mxu0 0.0
        %1024 = vmatpush1.msra.mxu0 0.0
        %1025 = vmatprep.subr.mxu0 0.0
        %1026 = vmatpush1.msra.mxu0 0.0
        %1027 = vmatprep.subr.mxu0 0.0
        %1028 = vmatpush1.msra.mxu0 0.0
        %1029 = vmatprep.subr.mxu0 0.0
        %1030 = vmatpush1.msra.mxu0 0.0
        %1031 = vmatprep.subr.mxu0 0.0
        %1032 = vmatpush1.msra.mxu0 0.0
        %1033 = vmatprep.subr.mxu0 0.0
        %1034 = vmatpush1.msra.mxu0 0.0
        %1035 = vmatprep.subr.mxu0 0.0
        %1036 = vmatpush1.msra.mxu0 0.0
        %1037 = vmatprep.mubr.f32.mxu0 0.0
        %1038 = vmatmul.mubr.f32.gmra.mrb[0].mxu0 %v900
        %v1039 = vpop.f32.mrb[0].mxu0
        %v1040 = vadd.f32 %v897, %v1039
        %v1041 = vpop.f32.mrb[0].mxu0
        %v1042 = vadd.f32 %v897, %v1041
        %1043 = vdwg.mxu0
        %1044 = vmatprep.subr.mxu0 %v865
        %1045 = vmatpush1.msra.mxu0 %v864
        %1046 = vmatprep.subr.mxu0 %v873
        %1047 = vmatpush1.msra.mxu0 %v872
        %1048 = vmatprep.subr.mxu0 %v881
        %1049 = vmatpush1.msra.mxu0 %v880
        %1050 = vmatprep.subr.mxu0 %v889
        %1051 = vmatpush1.msra.mxu0 %v888
        %1052 = vmatprep.subr.mxu0 0.0
        %1053 = vmatpush1.msra.mxu0 0.0
        %1054 = vmatprep.subr.mxu0 0.0
        %1055 = vmatpush1.msra.mxu0 0.0
        %1056 = vmatprep.subr.mxu0 0.0
        %1057 = vmatpush1.msra.mxu0 0.0
        %1058 = vmatprep.subr.mxu0 0.0
        %1059 = vmatpush1.msra.mxu0 0.0
        %1060 = vmatprep.subr.mxu0 0.0
        %1061 = vmatpush1.msra.mxu0 0.0
        %1062 = vmatprep.subr.mxu0 0.0
        %1063 = vmatpush1.msra.mxu0 0.0
        %1064 = vmatprep.subr.mxu0 0.0
        %1065 = vmatpush1.msra.mxu0 0.0
        %1066 = vmatprep.subr.mxu0 0.0
        %1067 = vmatpush1.msra.mxu0 0.0
        %1068 = vmatprep.subr.mxu0 0.0
        %1069 = vmatpush1.msra.mxu0 0.0
        %1070 = vmatprep.subr.mxu0 0.0
        %1071 = vmatpush1.msra.mxu0 0.0
        %1072 = vmatprep.subr.mxu0 0.0
        %1073 = vmatpush1.msra.mxu0 0.0
        %1074 = vmatprep.subr.mxu0 0.0
        %1075 = vmatpush1.msra.mxu0 0.0
        %1076 = vmatprep.subr.mxu0 0.0
        %1077 = vmatpush1.msra.mxu0 0.0
        %1078 = vmatprep.subr.mxu0 0.0
        %1079 = vmatpush1.msra.mxu0 0.0
        %1080 = vmatprep.subr.mxu0 0.0
        %1081 = vmatpush1.msra.mxu0 0.0
        %1082 = vmatprep.subr.mxu0 0.0
        %1083 = vmatpush1.msra.mxu0 0.0
        %1084 = vmatprep.subr.mxu0 0.0
        %1085 = vmatpush1.msra.mxu0 0.0
        %1086 = vmatprep.subr.mxu0 0.0
        %1087 = vmatpush1.msra.mxu0 0.0
        %1088 = vmatprep.subr.mxu0 0.0
        %1089 = vmatpush1.msra.mxu0 0.0
        %1090 = vmatprep.subr.mxu0 0.0
        %1091 = vmatpush1.msra.mxu0 0.0
        %1092 = vmatprep.subr.mxu0 0.0
        %1093 = vmatpush1.msra.mxu0 0.0
        %1094 = vmatprep.subr.mxu0 0.0
        %1095 = vmatpush1.msra.mxu0 0.0
        %1096 = vmatprep.subr.mxu0 0.0
        %1097 = vmatpush1.msra.mxu0 0.0
        %1098 = vmatprep.subr.mxu0 0.0
        %1099 = vmatpush1.msra.mxu0 0.0
        %1100 = vmatprep.subr.mxu0 0.0
        %1101 = vmatpush1.msra.mxu0 0.0
        %1102 = vmatprep.subr.mxu0 0.0
        %1103 = vmatpush1.msra.mxu0 0.0
        %1104 = vmatprep.subr.mxu0 0.0
        %1105 = vmatpush1.msra.mxu0 0.0
        %1106 = vmatprep.subr.mxu0 0.0
        %1107 = vmatpush1.msra.mxu0 0.0
        %1108 = vmatprep.mubr.f32.mxu0 0.0
        %1109 = vmatmul.mubr.f32.gmra.mrb[0].mxu0 %v900
        %v1110 = vpop.f32.mrb[0].mxu0
        %v1111 = vadd.f32 %v897, %v1110
        %v1112 = vpop.f32.mrb[0].mxu0
        %v1113 = vadd.f32 %v897, %v1112
        %1114 = vdwg.mxu0
        %1115 = vmatprep.subr.mxu0 %v867
        %1116 = vmatpush1.msra.mxu0 %v866
        %1117 = vmatprep.subr.mxu0 %v875
        %1118 = vmatpush1.msra.mxu0 %v874
        %1119 = vmatprep.subr.mxu0 %v883
        %1120 = vmatpush1.msra.mxu0 %v882
        %1121 = vmatprep.subr.mxu0 %v891
        %1122 = vmatpush1.msra.mxu0 %v890
        %1123 = vmatprep.subr.mxu0 0.0
        %1124 = vmatpush1.msra.mxu0 0.0
        %1125 = vmatprep.subr.mxu0 0.0
        %1126 = vmatpush1.msra.mxu0 0.0
        %1127 = vmatprep.subr.mxu0 0.0
        %1128 = vmatpush1.msra.mxu0 0.0
        %1129 = vmatprep.subr.mxu0 0.0
        %1130 = vmatpush1.msra.mxu0 0.0
        %1131 = vmatprep.subr.mxu0 0.0
        %1132 = vmatpush1.msra.mxu0 0.0
        %1133 = vmatprep.subr.mxu0 0.0
        %1134 = vmatpush1.msra.mxu0 0.0
        %1135 = vmatprep.subr.mxu0 0.0
        %1136 = vmatpush1.msra.mxu0 0.0
        %1137 = vmatprep.subr.mxu0 0.0
        %1138 = vmatpush1.msra.mxu0 0.0
        %1139 = vmatprep.subr.mxu0 0.0
        %1140 = vmatpush1.msra.mxu0 0.0
        %1141 = vmatprep.subr.mxu0 0.0
        %1142 = vmatpush1.msra.mxu0 0.0
        %1143 = vmatprep.subr.mxu0 0.0
        %1144 = vmatpush1.msra.mxu0 0.0
        %1145 = vmatprep.subr.mxu0 0.0
        %1146 = vmatpush1.msra.mxu0 0.0
        %1147 = vmatprep.subr.mxu0 0.0
        %1148 = vmatpush1.msra.mxu0 0.0
        %1149 = vmatprep.subr.mxu0 0.0
        %1150 = vmatpush1.msra.mxu0 0.0
        %1151 = vmatprep.subr.mxu0 0.0
        %1152 = vmatpush1.msra.mxu0 0.0
        %1153 = vmatprep.subr.mxu0 0.0
        %1154 = vmatpush1.msra.mxu0 0.0
        %1155 = vmatprep.subr.mxu0 0.0
        %1156 = vmatpush1.msra.mxu0 0.0
        %1157 = vmatprep.subr.mxu0 0.0
        %1158 = vmatpush1.msra.mxu0 0.0
        %1159 = vmatprep.subr.mxu0 0.0
        %1160 = vmatpush1.msra.mxu0 0.0
        %1161 = vmatprep.subr.mxu0 0.0
        %1162 = vmatpush1.msra.mxu0 0.0
        %1163 = vmatprep.subr.mxu0 0.0
        %1164 = vmatpush1.msra.mxu0 0.0
        %1165 = vmatprep.subr.mxu0 0.0
        %1166 = vmatpush1.msra.mxu0 0.0
        %1167 = vmatprep.subr.mxu0 0.0
        %1168 = vmatpush1.msra.mxu0 0.0
        %1169 = vmatprep.subr.mxu0 0.0
        %1170 = vmatpush1.msra.mxu0 0.0
        %1171 = vmatprep.subr.mxu0 0.0
        %1172 = vmatpush1.msra.mxu0 0.0
        %1173 = vmatprep.subr.mxu0 0.0
        %1174 = vmatpush1.msra.mxu0 0.0
        %1175 = vmatprep.subr.mxu0 0.0
        %1176 = vmatpush1.msra.mxu0 0.0
        %1177 = vmatprep.subr.mxu0 0.0
        %1178 = vmatpush1.msra.mxu0 0.0
        %1179 = vmatprep.mubr.f32.mxu0 0.0
        %1180 = vmatmul.mubr.f32.gmra.mrb[0].mxu0 %v900
        %v1181 = vpop.f32.mrb[0].mxu0
        %v1182 = vadd.f32 %v897, %v1181
        %v1183 = vpop.f32.mrb[0].mxu0
        %v1184 = vadd.f32 %v897, %v1183
        %1185 = vdwg.mxu0
        %v1186 = vlaneseq
        %v1187 = vshrl.u32 %v1186, 7
        %v1188 = vmul.f32 %v310, %v969
        %v1189 = vmul.f32 %v314, %v971
        %v1190 = vmul.f32 %v318, %v1040
        %v1191 = vmul.f32 %v322, %v1042
        %v1192 = vmul.f32 %v326, %v1111
        %v1193 = vmul.f32 %v330, %v1113
        %v1194 = vmul.f32 %v334, %v1182
        %v1195 = vmul.f32 %v338, %v1184
        %vm1196 = vcmp.eq.s32.totalorder %v1187, 2
        %v1197 = vsub.f32 2.0, %v1188
        %v1198 = vsub.f32 2.0, %v1189
        %v1199 = vsub.f32 2.0, %v1190
        %v1200 = vsub.f32 2.0, %v1191
        %v1201 = vsub.f32 2.0, %v1192
        %v1202 = vsub.f32 2.0, %v1193
        %v1203 = vsub.f32 2.0, %v1194
        %v1204 = vsub.f32 2.0, %v1195
        %v1205 = vsel %vm1196, 1, 0
        %vm1206 = vcmp.eq.s32.totalorder %v1205, 1
        %v1207 = vsel %vm1206, %v1197, %v1188
        %v1208 = vsel %vm1206, %v1198, %v1189
        %v1209 = vsel %vm1206, %v1199, %v1190
        %v1210 = vsel %vm1206, %v1200, %v1191
        %v1211 = vsel %vm1206, %v1201, %v1192
        %v1212 = vsel %vm1206, %v1202, %v1193
        %v1213 = vsel %vm1206, %v1203, %v1194
        %v1214 = vsel %vm1206, %v1204, %v1195
        %v1215 = vand.u32 2147483647, %v1207
        %v1216 = vand.u32 2147483647, %v1208
        %v1217 = vand.u32 2147483647, %v1209
        %v1218 = vand.u32 2147483647, %v1210
        %v1219 = vand.u32 2147483647, %v1211
        %v1220 = vand.u32 2147483647, %v1212
        %v1221 = vand.u32 2147483647, %v1213
        %v1222 = vand.u32 2147483647, %v1214
        %1223 = vst [vmem:[%s270] sm:$0xff] %v1215
        %1224 = vst [vmem:[%s270 + $0x8] sm:$0xff] %v1216
        %1225 = vst [vmem:[%s270 + $0x10] sm:$0xff] %v1217
        %1226 = vst [vmem:[%s270 + $0x18] sm:$0xff] %v1218
        %1227 = vst [vmem:[%s270 + $0x20] sm:$0xff] %v1219
        %1228 = vst [vmem:[%s270 + $0x28] sm:$0xff] %v1220
        %1229 = vst [vmem:[%s270 + $0x30] sm:$0xff] %v1221
        %1230 = vst [vmem:[%s270 + $0x38] sm:$0xff] %v1222
        %s1231 = sand.u32 %s181, 1
        %s1232 = scalar_lea.sflag [#allocation3], %s1231
        %s1233 = sand.u32 %s181, 1
        %s1234 = smul.addr %s1233, 64
        %s1235 = scalar_lea.vmem [#allocation2], %s1234
        // Predicated region
        $region49: #{tpu_custom_call.1} parent=47 // pred_check
          %p1236 = pneg %p191
        $region50: #{tpu_custom_call.1} parent=47 // pred_check_branch
          %1238 = sbr.rel (%p1236) target = $region52
        $region51: #{tpu_custom_call.1} parent=47 // pred_region
          %s1239 = smul.u32 8, %s21
          %s1241 = ssub.s32 1024, 1024
          %1242 = vsyncadd %s1232, %s1241
          %s1243 = smul.addr %s1239, 128
          %s1244 = scalar_lea.hbm %s7, %s1243
          %s1246 = sshll.u32 %s1235, 4
          %s1247 = int_to_ptr.vmem [resolvable:$true] %s1246
          %1249 = dma.vmem_to_hbm [thread:$0]  %s1247, 1024, %s1244, %s1232
        $region52: #{tpu_custom_call.1} parent=47 // pred_fallthru
          _
      $region48: #{tpu_custom_call.1} parent=5 // pred_fallthru
        _
      %p1250 = scmp.le.s32.totalorder 2, %s16
      // Predicated region
      $region53: #{tpu_custom_call.1} parent=5 // pred_check
        %p1251 = pneg %p1250
      $region54: #{tpu_custom_call.1} parent=5 // pred_check_branch
        %1253 = sbr.rel (%p1251) target = $region56
      $region55: #{tpu_custom_call.1} parent=5 // pred_region
        %s1254 = ssub.s32 %s16, 2
        // Predicated region
        $region57: #{tpu_custom_call.1} parent=55 // pred_check
          %p1255 = pneg %p197
        $region58: #{tpu_custom_call.1} parent=55 // pred_check_branch
          %1257 = sbr.rel (%p1255) target = $region60
        $region59: #{tpu_custom_call.1} parent=55 // pred_region
          %s1258 = sand.u32 %s182, 1
          %s1259 = scalar_lea.sflag [#allocation3], %s1258
          %s1260 = sand.u32 %s182, 1
          %s1261 = smul.addr %s1260, 64
          %s1262 = scalar_lea.vmem [#allocation2], %s1261
          %1263 = dma.done %s1259, 1024
        $region60: #{tpu_custom_call.1} parent=55 // pred_fallthru
          _
      $region56: #{tpu_custom_call.1} parent=5 // pred_fallthru
        _
    $region6: #{tpu_custom_call.1} parent=1 // loop_footer
      %s20 = sadd.s32 1, %s16
    $region7: #{tpu_custom_call.1} parent=1 // loop_footer_branch
      %15 = sbr.rel target = $region3
    $region8: #{tpu_custom_call.1} parent=1 // loop_exit
      _
    %1264 = vsyncpa [#allocation3], 1
    %s1265 = scalar_lea.sflag [#allocation3], 1
    %1266 = vsyncpa %s1265, 1

</llo_original>
